<compile_context>
chip_gen: v7x
topology: tpu7x:2x2x1
jax: 0.10.0
libtpu: 0.0.40
codegen_flags: <defaults>
</compile_context>

<pallas_src>
import jax
import jax.numpy as jnp
from jax.experimental import pallas as pl
from jax.experimental.pallas import tpu as pltpu

IN = 1024
HID = 64          # true hidden width; NOT padded (keeps w1 DMA minimal)
OUT = 36          # true output width of the module
OUT_PAD = 128     # logits padded to a full lane group for lane-dense softmax
NEG_BIG = -1e30   # bias on padded logit columns; exp() underflows them to 0


def mlp_kernel(x_ref, w1_ref, b1_ref, w2_ref, b2_ref, o_ref):
    # layer1: Linear(1024 -> 64). x cast to bf16 in-kernel (free under MXU
    # slack); w1 is pre-cast bf16; accumulation in f32 on the MXU.
    h = jnp.dot(x_ref[...].astype(jnp.bfloat16), w1_ref[...],
                preferred_element_type=jnp.float32)
    h = h + b1_ref[...]
    # sigmoid via tanh: single EUP transcendental, no exp overflow edge case
    h = 0.5 * (jnp.tanh(0.5 * h) + 1.0)

    # output layer: Linear(64 -> 128 padded). f32 operands (tiny matmul, the
    # extra MXU passes are free); padded w2 columns are zero, padded b2
    # columns are -1e30 so they vanish in the softmax.
    logits = jnp.dot(h, w2_ref[...], preferred_element_type=jnp.float32)
    logits = logits + b2_ref[...]

    # numerically stable softmax over the full 128-lane dim (padded columns
    # underflow to exactly 0 in exp); exact division for the normalizer.
    m = jnp.max(logits, axis=-1, keepdims=True)
    e = jnp.exp(logits - m)
    denom = jnp.sum(e, axis=-1, keepdims=True)
    probs = e / denom

    # masked store of only the true 36 output lanes (trivially cheap at 8x36)
    o_ref[...] = probs[:, :OUT].astype(o_ref.dtype)


def prepare_params(w1, b1, w2, b2):
    """One-time layout prep (hoisted out of the per-call path).

    Inputs are [in, out] / [1, out] layouts:
      w1:[1024,64], b1:[1,64], w2:[64,36], b2:[1,36]
    """
    w1_p = w1.astype(jnp.bfloat16)                          # MXU-native operand
    b1_p = b1.astype(jnp.float32).reshape(1, HID)
    w2_p = jnp.zeros((HID, OUT_PAD), jnp.float32).at[:, :OUT].set(
        w2.astype(jnp.float32))
    b2_p = jnp.full((1, OUT_PAD), NEG_BIG, jnp.float32).at[:, :OUT].set(
        b2.astype(jnp.float32))
    return w1_p, b1_p, w2_p, b2_p


@jax.jit
def net_forward(x, w1_p, b1_p, w2_p, b2_p):
    """x:[B,1024] f32; prepared params from prepare_params()."""
    B = x.shape[0]

    flops = 2 * B * IN * HID + 2 * B * HID * OUT_PAD
    transcendentals = B * HID + B * OUT_PAD            # tanh + exp
    bytes_accessed = (x.size * 4 + w1_p.size * 2 + b1_p.size * 4
                      + w2_p.size * 4 + b2_p.size * 4 + B * OUT * 4)

    return pl.pallas_call(
        mlp_kernel,
        out_shape=jax.ShapeDtypeStruct((B, OUT), jnp.float32),
        # Tiny problem: whole arrays fit in VMEM, single grid point.
        in_specs=[
            pl.BlockSpec(memory_space=pltpu.VMEM),  # x    [B, 1024] f32
            pl.BlockSpec(memory_space=pltpu.VMEM),  # w1   [1024, 64] bf16
            pl.BlockSpec(memory_space=pltpu.VMEM),  # b1   [1, 64] f32
            pl.BlockSpec(memory_space=pltpu.VMEM),  # w2   [64, 128] f32
            pl.BlockSpec(memory_space=pltpu.VMEM),  # b2   [1, 128] f32
        ],
        out_specs=pl.BlockSpec(memory_space=pltpu.VMEM),
        cost_estimate=pl.CostEstimate(flops=flops,
                                      transcendentals=transcendentals,
                                      bytes_accessed=bytes_accessed),
    )(x, w1_p, b1_p, w2_p, b2_p)
    # TODO(synk): for large batches add a batch grid axis
    # (BlockSpec((TM, IN), lambda i: (i, 0)), weights full-extent/resident,
    # dimension_semantics=("parallel",)); size TM per generation: >=512 and
    # 128-aligned on v5e (16 MiB scoped VMEM default), 256-aligned and
    # 512-2048 on v6e, and re-budget against v7x's 32 MiB scoped / 2 TCs.


if __name__ == "__main__":
    key = jax.random.PRNGKey(0)
    kx, k1, kb1, k2, kb2 = jax.random.split(key, 5)

    B = 8

    # Deterministic synthetic parameters (shapes from Net.__init__),
    # stored as [in, out] (transpose of PyTorch's [out, in]) and [1, out].
    x = jax.random.normal(kx, (B, IN), dtype=jnp.float32)
    w1 = jax.random.normal(k1, (IN, HID), dtype=jnp.float32) * 0.02
    b1 = jax.random.normal(kb1, (1, HID), dtype=jnp.float32) * 0.02
    w2 = jax.random.normal(k2, (HID, OUT), dtype=jnp.float32) * 0.02
    b2 = jax.random.normal(kb2, (1, OUT), dtype=jnp.float32) * 0.02

    # One-time prep, outside the per-call path.
    params = jax.block_until_ready(prepare_params(w1, b1, w2, b2))

    out = net_forward(x, *params)
    out = jax.block_until_ready(out)

    # Pure-JAX f32 reference for the module's forward pass.
    ref = jax.nn.softmax(jax.nn.sigmoid(x @ w1 + b1) @ w2 + b2, axis=-1)

    assert out.shape == (B, OUT)
    row_sums = jnp.sum(out, axis=-1)
    assert bool(jnp.all(jnp.abs(row_sums - 1.0) < 1e-3))
    assert bool(jnp.all(out >= 0.0))
    assert bool(jnp.max(jnp.abs(out - ref)) < 1e-2)

    print("KERNEL_OK")
</pallas_src>

<mosaic_0001>
module attributes {stable_mosaic.version = 11 : i64} {
  func.func @mlp_kernel(%arg0: memref<8x1024xf32, #tpu.memory_space<vmem>>, %arg1: memref<1024x64xbf16, #tpu.memory_space<vmem>>, %arg2: memref<1x64xf32, #tpu.memory_space<vmem>>, %arg3: memref<64x128xf32, #tpu.memory_space<vmem>>, %arg4: memref<1x128xf32, #tpu.memory_space<vmem>>, %arg5: memref<8x36xf32, #tpu.memory_space<vmem>>) attributes {dimension_semantics = [], scalar_prefetch = 0 : i64, scratch_operands = 0 : i64, tpu.core_type = #tpu.core_type<tc>} {
    %c0 = arith.constant 0 : index
    %c0_0 = arith.constant 0 : index
    %0 = vector.load %arg0[%c0, %c0_0] : memref<8x1024xf32, #tpu.memory_space<vmem>>, vector<8x1024xf32>
    %1 = arith.truncf %0 : vector<8x1024xf32> to vector<8x1024xbf16>
    %c0_1 = arith.constant 0 : index
    %c0_2 = arith.constant 0 : index
    %2 = vector.load %arg1[%c0_1, %c0_2] : memref<1024x64xbf16, #tpu.memory_space<vmem>>, vector<1024x64xbf16>
    %cst = arith.constant dense<0.000000e+00> : vector<8x64xf32>
    %3 = tpu.matmul %1, %2, %cst {dimension_numbers = #tpu.dot_dimension_numbers<[1], [0], [0], [1], [0, 0, 1, 1], [], []>} : vector<8x1024xbf16>, vector<1024x64xbf16>, vector<8x64xf32> -> vector<8x64xf32>
    %c0_3 = arith.constant 0 : index
    %c0_4 = arith.constant 0 : index
    %4 = vector.load %arg2[%c0_3, %c0_4] : memref<1x64xf32, #tpu.memory_space<vmem>>, vector<1x64xf32>
    %5 = vector.broadcast %4 : vector<1x64xf32> to vector<8x64xf32>
    %6 = arith.addf %3, %5 : vector<8x64xf32>
    %cst_5 = arith.constant 5.000000e-01 : f32
    %7 = vector.broadcast %cst_5 : f32 to vector<8x64xf32>
    %8 = arith.mulf %7, %6 : vector<8x64xf32>
    %9 = math.tanh %8 : vector<8x64xf32>
    %cst_6 = arith.constant 1.000000e+00 : f32
    %10 = vector.broadcast %cst_6 : f32 to vector<8x64xf32>
    %11 = arith.addf %9, %10 : vector<8x64xf32>
    %cst_7 = arith.constant 5.000000e-01 : f32
    %12 = vector.broadcast %cst_7 : f32 to vector<8x64xf32>
    %13 = arith.mulf %12, %11 : vector<8x64xf32>
    %c0_8 = arith.constant 0 : index
    %c0_9 = arith.constant 0 : index
    %14 = vector.load %arg3[%c0_8, %c0_9] : memref<64x128xf32, #tpu.memory_space<vmem>>, vector<64x128xf32>
    %cst_10 = arith.constant dense<0.000000e+00> : vector<8x128xf32>
    %15 = tpu.matmul %13, %14, %cst_10 {dimension_numbers = #tpu.dot_dimension_numbers<[1], [0], [0], [1], [0, 0, 1, 1], [], []>} : vector<8x64xf32>, vector<64x128xf32>, vector<8x128xf32> -> vector<8x128xf32>
    %c0_11 = arith.constant 0 : index
    %c0_12 = arith.constant 0 : index
    %16 = vector.load %arg4[%c0_11, %c0_12] : memref<1x128xf32, #tpu.memory_space<vmem>>, vector<1x128xf32>
    %17 = vector.broadcast %16 : vector<1x128xf32> to vector<8x128xf32>
    %18 = arith.addf %15, %17 : vector<8x128xf32>
    %cst_13 = arith.constant dense<0xFF800000> : vector<8xf32>
    %19 = vector.multi_reduction <maximumf>, %18, %cst_13 [1] : vector<8x128xf32> to vector<8xf32>
    %20 = vector.shape_cast %19 : vector<8xf32> to vector<8x1xf32>
    %21 = vector.broadcast %20 : vector<8x1xf32> to vector<8x128xf32>
    %22 = arith.subf %18, %21 : vector<8x128xf32>
    %23 = math.exp %22 : vector<8x128xf32>
    %cst_14 = arith.constant dense<0.000000e+00> : vector<8xf32>
    %24 = vector.multi_reduction <add>, %23, %cst_14 [1] : vector<8x128xf32> to vector<8xf32>
    %25 = vector.shape_cast %24 : vector<8xf32> to vector<8x1xf32>
    %26 = vector.broadcast %25 : vector<8x1xf32> to vector<8x128xf32>
    %27 = arith.divf %23, %26 : vector<8x128xf32>
    %28 = vector.extract_strided_slice %27 {offsets = [0, 0], sizes = [8, 36], strides = [1, 1]} : vector<8x128xf32> to vector<8x36xf32>
    %c0_15 = arith.constant 0 : index
    %c0_16 = arith.constant 0 : index
    %29 = vector.load %arg5[%c0_15, %c0_16] : memref<8x36xf32, #tpu.memory_space<vmem>>, vector<8x36xf32>
    tpu.vector_store %arg5[%c0_15, %c0_16], %28 {strides = array<i32>} : memref<8x36xf32, #tpu.memory_space<vmem>>, vector<8x36xf32>,
    return
  }
}

</mosaic_0001>

<llo_original>
// kernel: net_forward.1
$region0: #{net_forward.1}
  #allocation0 [shape = 'u32[]', space=smem, size = 0x4, offset = 0x4, fixed_abs, tag = 'smem constant byte address 0x4 - core index']
  #allocation1 [shape = 'u32[144,128]{1,0:T(1,128)}', space=vmem, size = 0x12000, scoped, tag = 'internal scratch']
  %s0 = inlined_call_operand.vmem [shape: f32[8,1024], index: 0, kind: input, shape index: {}]
  %s1 = inlined_call_operand.vmem [shape: bf16[1024,64], index: 1, kind: input, shape index: {}]
  %s2 = inlined_call_operand.vmem [shape: f32[1,64], index: 2, kind: input, shape index: {}]
  %s3 = inlined_call_operand.vmem [shape: f32[64,128], index: 3, kind: input, shape index: {}]
  %s4 = inlined_call_operand.vmem [shape: f32[1,128], index: 4, kind: input, shape index: {}]
  %s5 = inlined_call_operand.hbm [shape: f32[8,36], index: 5, kind: output, shape index: {}]
  %s6 = sld [smem:[#allocation0]]
  $region30: #{net_forward.1} parent=0
    _
  %s8 = ssub.s32 1, %s6
  %s9 = scalar_select 0, %s8, %s6
  $region1: #{net_forward.1} parent=0
    #allocation2 [shape = 'u8[4096]{0}', space=vmem, size = 0x1000, scoped, tag = 'output window, operand 0, single buffered']
    #allocation3 [shape = 's32[1]{0}', space=sflag, size = 0x4, scoped, tag = 'scoped memory for net_forward.1']
    %10 = vsyncpa [#allocation3], 0
    // Predicated region
    $region2: #{net_forward.1} parent=1 // pred_check
      _
    $region3: #{net_forward.1} parent=1 // pred_check_branch
      %12 = sbr.rel (0) target = $region5
    $region4: #{net_forward.1} parent=1 // pred_region
      _
    $region5: #{net_forward.1} parent=1 // pred_fallthru
      _
    // Predicated region
    $region6: #{net_forward.1} parent=1 // pred_check
      _
    $region7: #{net_forward.1} parent=1 // pred_check_branch
      %14 = sbr.rel (0) target = $region9
    $region8: #{net_forward.1} parent=1 // pred_region
      _
    $region9: #{net_forward.1} parent=1 // pred_fallthru
      _
    // Predicated region
    $region10: #{net_forward.1} parent=1 // pred_check
      _
    $region11: #{net_forward.1} parent=1 // pred_check_branch
      %16 = sbr.rel (0) target = $region13
    $region12: #{net_forward.1} parent=1 // pred_region
      _
    $region13: #{net_forward.1} parent=1 // pred_fallthru
      _
    // Predicated region
    $region14: #{net_forward.1} parent=1 // pred_check
      _
    $region15: #{net_forward.1} parent=1 // pred_check_branch
      %18 = sbr.rel (0) target = $region17
    $region16: #{net_forward.1} parent=1 // pred_region
      _
    $region17: #{net_forward.1} parent=1 // pred_fallthru
      _
    // Predicated region
    $region18: #{net_forward.1} parent=1 // pred_check
      _
    $region19: #{net_forward.1} parent=1 // pred_check_branch
      %20 = sbr.rel (0) target = $region21
    $region20: #{net_forward.1} parent=1 // pred_region
      _
    $region21: #{net_forward.1} parent=1 // pred_fallthru
      _
    %v22 = vld [vmem:[%s0] sm:$0xff]
    %v23 = vld [vmem:[%s0 + $0x8] sm:$0xff]
    %v24 = vld [vmem:[%s0 + $0x10] sm:$0xff]
    %v25 = vld [vmem:[%s0 + $0x18] sm:$0xff]
    %v26 = vld [vmem:[%s0 + $0x20] sm:$0xff]
    %v27 = vld [vmem:[%s0 + $0x28] sm:$0xff]
    %v28 = vld [vmem:[%s0 + $0x30] sm:$0xff]
    %v29 = vld [vmem:[%s0 + $0x38] sm:$0xff]
    %v30 = vpack.c.bf16 %v22, %v22
    %v31 = vpack.c.bf16 %v23, %v23
    %v32 = vpack.c.bf16 %v24, %v24
    %v33 = vpack.c.bf16 %v25, %v25
    %v34 = vpack.c.bf16 %v26, %v26
    %v35 = vpack.c.bf16 %v27, %v27
    %v36 = vpack.c.bf16 %v28, %v28
    %v37 = vpack.c.bf16 %v29, %v29
    %v38 = vld [vmem:[%s1] sm:$0xf]
    %v39 = vld [vmem:[%s1 + $0x4] sm:$0xf]
    %v40 = vld [vmem:[%s1 + $0x8] sm:$0xf]
    %v41 = vld [vmem:[%s1 + $0xc] sm:$0xf]
    %v42 = vld [vmem:[%s1 + $0x10] sm:$0xf]
    %v43 = vld [vmem:[%s1 + $0x14] sm:$0xf]
    %v44 = vld [vmem:[%s1 + $0x18] sm:$0xf]
    %v45 = vld [vmem:[%s1 + $0x1c] sm:$0xf]
    %v46 = vld [vmem:[%s1 + $0x20] sm:$0xf]
    %v47 = vld [vmem:[%s1 + $0x24] sm:$0xf]
    %v48 = vld [vmem:[%s1 + $0x28] sm:$0xf]
    %v49 = vld [vmem:[%s1 + $0x2c] sm:$0xf]
    %v50 = vld [vmem:[%s1 + $0x30] sm:$0xf]
    %v51 = vld [vmem:[%s1 + $0x34] sm:$0xf]
    %v52 = vld [vmem:[%s1 + $0x38] sm:$0xf]
    %v53 = vld [vmem:[%s1 + $0x3c] sm:$0xf]
    %v54 = vld [vmem:[%s1 + $0x40] sm:$0xf]
    %v55 = vld [vmem:[%s1 + $0x44] sm:$0xf]
    %v56 = vld [vmem:[%s1 + $0x48] sm:$0xf]
    %v57 = vld [vmem:[%s1 + $0x4c] sm:$0xf]
    %v58 = vld [vmem:[%s1 + $0x50] sm:$0xf]
    %v59 = vld [vmem:[%s1 + $0x54] sm:$0xf]
    %v60 = vld [vmem:[%s1 + $0x58] sm:$0xf]
    %v61 = vld [vmem:[%s1 + $0x5c] sm:$0xf]
    %v62 = vld [vmem:[%s1 + $0x60] sm:$0xf]
    %v63 = vld [vmem:[%s1 + $0x64] sm:$0xf]
    %v64 = vld [vmem:[%s1 + $0x68] sm:$0xf]
    %v65 = vld [vmem:[%s1 + $0x6c] sm:$0xf]
    %v66 = vld [vmem:[%s1 + $0x70] sm:$0xf]
    %v67 = vld [vmem:[%s1 + $0x74] sm:$0xf]
    %v68 = vld [vmem:[%s1 + $0x78] sm:$0xf]
    %v69 = vld [vmem:[%s1 + $0x7c] sm:$0xf]
    %v70 = vld [vmem:[%s1 + $0x80] sm:$0xf]
    %v71 = vld [vmem:[%s1 + $0x84] sm:$0xf]
    %v72 = vld [vmem:[%s1 + $0x88] sm:$0xf]
    %v73 = vld [vmem:[%s1 + $0x8c] sm:$0xf]
    %v74 = vld [vmem:[%s1 + $0x90] sm:$0xf]
    %v75 = vld [vmem:[%s1 + $0x94] sm:$0xf]
    %v76 = vld [vmem:[%s1 + $0x98] sm:$0xf]
    %v77 = vld [vmem:[%s1 + $0x9c] sm:$0xf]
    %v78 = vld [vmem:[%s1 + $0xa0] sm:$0xf]
    %v79 = vld [vmem:[%s1 + $0xa4] sm:$0xf]
    %v80 = vld [vmem:[%s1 + $0xa8] sm:$0xf]
    %v81 = vld [vmem:[%s1 + $0xac] sm:$0xf]
    %v82 = vld [vmem:[%s1 + $0xb0] sm:$0xf]
    %v83 = vld [vmem:[%s1 + $0xb4] sm:$0xf]
    %v84 = vld [vmem:[%s1 + $0xb8] sm:$0xf]
    %v85 = vld [vmem:[%s1 + $0xbc] sm:$0xf]
    %v86 = vld [vmem:[%s1 + $0xc0] sm:$0xf]
    %v87 = vld [vmem:[%s1 + $0xc4] sm:$0xf]
    %v88 = vld [vmem:[%s1 + $0xc8] sm:$0xf]
    %v89 = vld [vmem:[%s1 + $0xcc] sm:$0xf]
    %v90 = vld [vmem:[%s1 + $0xd0] sm:$0xf]
    %v91 = vld [vmem:[%s1 + $0xd4] sm:$0xf]
    %v92 = vld [vmem:[%s1 + $0xd8] sm:$0xf]
    %v93 = vld [vmem:[%s1 + $0xdc] sm:$0xf]
    %v94 = vld [vmem:[%s1 + $0xe0] sm:$0xf]
    %v95 = vld [vmem:[%s1 + $0xe4] sm:$0xf]
    %v96 = vld [vmem:[%s1 + $0xe8] sm:$0xf]
    %v97 = vld [vmem:[%s1 + $0xec] sm:$0xf]
    %v98 = vld [vmem:[%s1 + $0xf0] sm:$0xf]
    %v99 = vld [vmem:[%s1 + $0xf4] sm:$0xf]
    %v100 = vld [vmem:[%s1 + $0xf8] sm:$0xf]
    %v101 = vld [vmem:[%s1 + $0xfc] sm:$0xf]
    %v102 = vld [vmem:[%s1 + $0x100] sm:$0xf]
    %v103 = vld [vmem:[%s1 + $0x104] sm:$0xf]
    %v104 = vld [vmem:[%s1 + $0x108] sm:$0xf]
    %v105 = vld [vmem:[%s1 + $0x10c] sm:$0xf]
    %v106 = vld [vmem:[%s1 + $0x110] sm:$0xf]
    %v107 = vld [vmem:[%s1 + $0x114] sm:$0xf]
    %v108 = vld [vmem:[%s1 + $0x118] sm:$0xf]
    %v109 = vld [vmem:[%s1 + $0x11c] sm:$0xf]
    %v110 = vld [vmem:[%s1 + $0x120] sm:$0xf]
    %v111 = vld [vmem:[%s1 + $0x124] sm:$0xf]
    %v112 = vld [vmem:[%s1 + $0x128] sm:$0xf]
    %v113 = vld [vmem:[%s1 + $0x12c] sm:$0xf]
    %v114 = vld [vmem:[%s1 + $0x130] sm:$0xf]
    %v115 = vld [vmem:[%s1 + $0x134] sm:$0xf]
    %v116 = vld [vmem:[%s1 + $0x138] sm:$0xf]
    %v117 = vld [vmem:[%s1 + $0x13c] sm:$0xf]
    %v118 = vld [vmem:[%s1 + $0x140] sm:$0xf]
    %v119 = vld [vmem:[%s1 + $0x144] sm:$0xf]
    %v120 = vld [vmem:[%s1 + $0x148] sm:$0xf]
    %v121 = vld [vmem:[%s1 + $0x14c] sm:$0xf]
    %v122 = vld [vmem:[%s1 + $0x150] sm:$0xf]
    %v123 = vld [vmem:[%s1 + $0x154] sm:$0xf]
    %v124 = vld [vmem:[%s1 + $0x158] sm:$0xf]
    %v125 = vld [vmem:[%s1 + $0x15c] sm:$0xf]
    %v126 = vld [vmem:[%s1 + $0x160] sm:$0xf]
    %v127 = vld [vmem:[%s1 + $0x164] sm:$0xf]
    %v128 = vld [vmem:[%s1 + $0x168] sm:$0xf]
    %v129 = vld [vmem:[%s1 + $0x16c] sm:$0xf]
    %v130 = vld [vmem:[%s1 + $0x170] sm:$0xf]
    %v131 = vld [vmem:[%s1 + $0x174] sm:$0xf]
    %v132 = vld [vmem:[%s1 + $0x178] sm:$0xf]
    %v133 = vld [vmem:[%s1 + $0x17c] sm:$0xf]
    %v134 = vld [vmem:[%s1 + $0x180] sm:$0xf]
    %v135 = vld [vmem:[%s1 + $0x184] sm:$0xf]
    %v136 = vld [vmem:[%s1 + $0x188] sm:$0xf]
    %v137 = vld [vmem:[%s1 + $0x18c] sm:$0xf]
    %v138 = vld [vmem:[%s1 + $0x190] sm:$0xf]
    %v139 = vld [vmem:[%s1 + $0x194] sm:$0xf]
    %v140 = vld [vmem:[%s1 + $0x198] sm:$0xf]
    %v141 = vld [vmem:[%s1 + $0x19c] sm:$0xf]
    %v142 = vld [vmem:[%s1 + $0x1a0] sm:$0xf]
    %v143 = vld [vmem:[%s1 + $0x1a4] sm:$0xf]
    %v144 = vld [vmem:[%s1 + $0x1a8] sm:$0xf]
    %v145 = vld [vmem:[%s1 + $0x1ac] sm:$0xf]
    %v146 = vld [vmem:[%s1 + $0x1b0] sm:$0xf]
    %v147 = vld [vmem:[%s1 + $0x1b4] sm:$0xf]
    %v148 = vld [vmem:[%s1 + $0x1b8] sm:$0xf]
    %v149 = vld [vmem:[%s1 + $0x1bc] sm:$0xf]
    %v150 = vld [vmem:[%s1 + $0x1c0] sm:$0xf]
    %v151 = vld [vmem:[%s1 + $0x1c4] sm:$0xf]
    %v152 = vld [vmem:[%s1 + $0x1c8] sm:$0xf]
    %v153 = vld [vmem:[%s1 + $0x1cc] sm:$0xf]
    %v154 = vld [vmem:[%s1 + $0x1d0] sm:$0xf]
    %v155 = vld [vmem:[%s1 + $0x1d4] sm:$0xf]
    %v156 = vld [vmem:[%s1 + $0x1d8] sm:$0xf]
    %v157 = vld [vmem:[%s1 + $0x1dc] sm:$0xf]
    %v158 = vld [vmem:[%s1 + $0x1e0] sm:$0xf]
    %v159 = vld [vmem:[%s1 + $0x1e4] sm:$0xf]
    %v160 = vld [vmem:[%s1 + $0x1e8] sm:$0xf]
    %v161 = vld [vmem:[%s1 + $0x1ec] sm:$0xf]
    %v162 = vld [vmem:[%s1 + $0x1f0] sm:$0xf]
    %v163 = vld [vmem:[%s1 + $0x1f4] sm:$0xf]
    %v164 = vld [vmem:[%s1 + $0x1f8] sm:$0xf]
    %v165 = vld [vmem:[%s1 + $0x1fc] sm:$0xf]
    %v166 = vld [vmem:[%s2] sm:$0x1]
    %v168 = vlaneseq
    %v169 = vshrl.u32 %v168, 7
    %v170 = vsub.s32 0, %v169
    %v171 = vrot.slane %v166, %v170
    %v301 = vunpack.c.l.b16 %v38
    %v302 = vunpack.c.l.b16 %v39
    %v303 = vunpack.c.l.b16 %v40
    %v304 = vunpack.c.l.b16 %v41
    %v305 = vunpack.c.l.b16 %v42
    %v306 = vunpack.c.l.b16 %v43
    %v307 = vunpack.c.l.b16 %v44
    %v308 = vunpack.c.l.b16 %v45
    %v309 = vunpack.c.l.b16 %v46
    %v310 = vunpack.c.l.b16 %v47
    %v311 = vunpack.c.l.b16 %v48
    %v312 = vunpack.c.l.b16 %v49
    %v313 = vunpack.c.l.b16 %v50
    %v314 = vunpack.c.l.b16 %v51
    %v315 = vunpack.c.l.b16 %v52
    %v316 = vunpack.c.l.b16 %v53
    %v317 = vunpack.c.l.b16 %v54
    %v318 = vunpack.c.l.b16 %v55
    %v319 = vunpack.c.l.b16 %v56
    %v320 = vunpack.c.l.b16 %v57
    %v321 = vunpack.c.l.b16 %v58
    %v322 = vunpack.c.l.b16 %v59
    %v323 = vunpack.c.l.b16 %v60
    %v324 = vunpack.c.l.b16 %v61
    %v325 = vunpack.c.l.b16 %v62
    %v326 = vunpack.c.l.b16 %v63
    %v327 = vunpack.c.l.b16 %v64
    %v328 = vunpack.c.l.b16 %v65
    %v329 = vunpack.c.l.b16 %v66
    %v330 = vunpack.c.l.b16 %v67
    %v331 = vunpack.c.l.b16 %v68
    %v332 = vunpack.c.l.b16 %v69
    %v333 = vunpack.c.l.b16 %v70
    %v334 = vunpack.c.l.b16 %v71
    %v335 = vunpack.c.l.b16 %v72
    %v336 = vunpack.c.l.b16 %v73
    %v337 = vunpack.c.l.b16 %v74
    %v338 = vunpack.c.l.b16 %v75
    %v339 = vunpack.c.l.b16 %v76
    %v340 = vunpack.c.l.b16 %v77
    %v341 = vunpack.c.l.b16 %v78
    %v342 = vunpack.c.l.b16 %v79
    %v343 = vunpack.c.l.b16 %v80
    %v344 = vunpack.c.l.b16 %v81
    %v345 = vunpack.c.l.b16 %v82
    %v346 = vunpack.c.l.b16 %v83
    %v347 = vunpack.c.l.b16 %v84
    %v348 = vunpack.c.l.b16 %v85
    %v349 = vunpack.c.l.b16 %v86
    %v350 = vunpack.c.l.b16 %v87
    %v351 = vunpack.c.l.b16 %v88
    %v352 = vunpack.c.l.b16 %v89
    %v353 = vunpack.c.l.b16 %v90
    %v354 = vunpack.c.l.b16 %v91
    %v355 = vunpack.c.l.b16 %v92
    %v356 = vunpack.c.l.b16 %v93
    %v357 = vunpack.c.l.b16 %v94
    %v358 = vunpack.c.l.b16 %v95
    %v359 = vunpack.c.l.b16 %v96
    %v360 = vunpack.c.l.b16 %v97
    %v361 = vunpack.c.l.b16 %v98
    %v362 = vunpack.c.l.b16 %v99
    %v363 = vunpack.c.l.b16 %v100
    %v364 = vunpack.c.l.b16 %v101
    %v365 = vunpack.c.l.b16 %v102
    %v366 = vunpack.c.l.b16 %v103
    %v367 = vunpack.c.l.b16 %v104
    %v368 = vunpack.c.l.b16 %v105
    %v369 = vunpack.c.l.b16 %v106
    %v370 = vunpack.c.l.b16 %v107
    %v371 = vunpack.c.l.b16 %v108
    %v372 = vunpack.c.l.b16 %v109
    %v373 = vunpack.c.l.b16 %v110
    %v374 = vunpack.c.l.b16 %v111
    %v375 = vunpack.c.l.b16 %v112
    %v376 = vunpack.c.l.b16 %v113
    %v377 = vunpack.c.l.b16 %v114
    %v378 = vunpack.c.l.b16 %v115
    %v379 = vunpack.c.l.b16 %v116
    %v380 = vunpack.c.l.b16 %v117
    %v381 = vunpack.c.l.b16 %v118
    %v382 = vunpack.c.l.b16 %v119
    %v383 = vunpack.c.l.b16 %v120
    %v384 = vunpack.c.l.b16 %v121
    %v385 = vunpack.c.l.b16 %v122
    %v386 = vunpack.c.l.b16 %v123
    %v387 = vunpack.c.l.b16 %v124
    %v388 = vunpack.c.l.b16 %v125
    %v389 = vunpack.c.l.b16 %v126
    %v390 = vunpack.c.l.b16 %v127
    %v391 = vunpack.c.l.b16 %v128
    %v392 = vunpack.c.l.b16 %v129
    %v393 = vunpack.c.l.b16 %v130
    %v394 = vunpack.c.l.b16 %v131
    %v395 = vunpack.c.l.b16 %v132
    %v396 = vunpack.c.l.b16 %v133
    %v397 = vunpack.c.l.b16 %v134
    %v398 = vunpack.c.l.b16 %v135
    %v399 = vunpack.c.l.b16 %v136
    %v400 = vunpack.c.l.b16 %v137
    %v401 = vunpack.c.l.b16 %v138
    %v402 = vunpack.c.l.b16 %v139
    %v403 = vunpack.c.l.b16 %v140
    %v404 = vunpack.c.l.b16 %v141
    %v405 = vunpack.c.l.b16 %v142
    %v406 = vunpack.c.l.b16 %v143
    %v407 = vunpack.c.l.b16 %v144
    %v408 = vunpack.c.l.b16 %v145
    %v409 = vunpack.c.l.b16 %v146
    %v410 = vunpack.c.l.b16 %v147
    %v411 = vunpack.c.l.b16 %v148
    %v412 = vunpack.c.l.b16 %v149
    %v413 = vunpack.c.l.b16 %v150
    %v414 = vunpack.c.l.b16 %v151
    %v415 = vunpack.c.l.b16 %v152
    %v416 = vunpack.c.l.b16 %v153
    %v417 = vunpack.c.l.b16 %v154
    %v418 = vunpack.c.l.b16 %v155
    %v419 = vunpack.c.l.b16 %v156
    %v420 = vunpack.c.l.b16 %v157
    %v421 = vunpack.c.l.b16 %v158
    %v422 = vunpack.c.l.b16 %v159
    %v423 = vunpack.c.l.b16 %v160
    %v424 = vunpack.c.l.b16 %v161
    %v425 = vunpack.c.l.b16 %v162
    %v426 = vunpack.c.l.b16 %v163
    %v427 = vunpack.c.l.b16 %v164
    %v428 = vunpack.c.l.b16 %v165
    %v429 = vpack.c.b16 %v302, %v301
    %v430 = vpack.c.b16 %v304, %v303
    %v431 = vpack.c.b16 %v306, %v305
    %v432 = vpack.c.b16 %v308, %v307
    %v433 = vpack.c.b16 %v310, %v309
    %v434 = vpack.c.b16 %v312, %v311
    %v435 = vpack.c.b16 %v314, %v313
    %v436 = vpack.c.b16 %v316, %v315
    %v437 = vpack.c.b16 %v318, %v317
    %v438 = vpack.c.b16 %v320, %v319
    %v439 = vpack.c.b16 %v322, %v321
    %v440 = vpack.c.b16 %v324, %v323
    %v441 = vpack.c.b16 %v326, %v325
    %v442 = vpack.c.b16 %v328, %v327
    %v443 = vpack.c.b16 %v330, %v329
    %v444 = vpack.c.b16 %v332, %v331
    %v445 = vpack.c.b16 %v334, %v333
    %v446 = vpack.c.b16 %v336, %v335
    %v447 = vpack.c.b16 %v338, %v337
    %v448 = vpack.c.b16 %v340, %v339
    %v449 = vpack.c.b16 %v342, %v341
    %v450 = vpack.c.b16 %v344, %v343
    %v451 = vpack.c.b16 %v346, %v345
    %v452 = vpack.c.b16 %v348, %v347
    %v453 = vpack.c.b16 %v350, %v349
    %v454 = vpack.c.b16 %v352, %v351
    %v455 = vpack.c.b16 %v354, %v353
    %v456 = vpack.c.b16 %v356, %v355
    %v457 = vpack.c.b16 %v358, %v357
    %v458 = vpack.c.b16 %v360, %v359
    %v459 = vpack.c.b16 %v362, %v361
    %v460 = vpack.c.b16 %v364, %v363
    %v461 = vpack.c.b16 %v366, %v365
    %v462 = vpack.c.b16 %v368, %v367
    %v463 = vpack.c.b16 %v370, %v369
    %v464 = vpack.c.b16 %v372, %v371
    %v465 = vpack.c.b16 %v374, %v373
    %v466 = vpack.c.b16 %v376, %v375
    %v467 = vpack.c.b16 %v378, %v377
    %v468 = vpack.c.b16 %v380, %v379
    %v469 = vpack.c.b16 %v382, %v381
    %v470 = vpack.c.b16 %v384, %v383
    %v471 = vpack.c.b16 %v386, %v385
    %v472 = vpack.c.b16 %v388, %v387
    %v473 = vpack.c.b16 %v390, %v389
    %v474 = vpack.c.b16 %v392, %v391
    %v475 = vpack.c.b16 %v394, %v393
    %v476 = vpack.c.b16 %v396, %v395
    %v477 = vpack.c.b16 %v398, %v397
    %v478 = vpack.c.b16 %v400, %v399
    %v479 = vpack.c.b16 %v402, %v401
    %v480 = vpack.c.b16 %v404, %v403
    %v481 = vpack.c.b16 %v406, %v405
    %v482 = vpack.c.b16 %v408, %v407
    %v483 = vpack.c.b16 %v410, %v409
    %v484 = vpack.c.b16 %v412, %v411
    %v485 = vpack.c.b16 %v414, %v413
    %v486 = vpack.c.b16 %v416, %v415
    %v487 = vpack.c.b16 %v418, %v417
    %v488 = vpack.c.b16 %v420, %v419
    %v489 = vpack.c.b16 %v422, %v421
    %v490 = vpack.c.b16 %v424, %v423
    %v491 = vpack.c.b16 %v426, %v425
    %v492 = vpack.c.b16 %v428, %v427
    %557 = vmatprep.subr.bf16.mxu0 0
    %558 = vmatpush1.bf16.msra.mxu0 %v429
    %559 = vmatprep.subr.bf16.mxu0 0
    %560 = vmatpush1.bf16.msra.mxu0 %v430
    %561 = vmatprep.subr.bf16.mxu0 0
    %562 = vmatpush1.bf16.msra.mxu0 %v431
    %563 = vmatprep.subr.bf16.mxu0 0
    %564 = vmatpush1.bf16.msra.mxu0 %v432
    %565 = vmatprep.subr.bf16.mxu0 0
    %566 = vmatpush1.bf16.msra.mxu0 %v433
    %567 = vmatprep.subr.bf16.mxu0 0
    %568 = vmatpush1.bf16.msra.mxu0 %v434
    %569 = vmatprep.subr.bf16.mxu0 0
    %570 = vmatpush1.bf16.msra.mxu0 %v435
    %571 = vmatprep.subr.bf16.mxu0 0
    %572 = vmatpush1.bf16.msra.mxu0 %v436
    %573 = vmatprep.subr.bf16.mxu0 0
    %574 = vmatpush1.bf16.msra.mxu0 %v437
    %575 = vmatprep.subr.bf16.mxu0 0
    %576 = vmatpush1.bf16.msra.mxu0 %v438
    %577 = vmatprep.subr.bf16.mxu0 0
    %578 = vmatpush1.bf16.msra.mxu0 %v439
    %579 = vmatprep.subr.bf16.mxu0 0
    %580 = vmatpush1.bf16.msra.mxu0 %v440
    %581 = vmatprep.subr.bf16.mxu0 0
    %582 = vmatpush1.bf16.msra.mxu0 %v441
    %583 = vmatprep.subr.bf16.mxu0 0
    %584 = vmatpush1.bf16.msra.mxu0 %v442
    %585 = vmatprep.subr.bf16.mxu0 0
    %586 = vmatpush1.bf16.msra.mxu0 %v443
    %587 = vmatprep.subr.bf16.mxu0 0
    %588 = vmatpush1.bf16.msra.mxu0 %v444
    %589 = vmatprep.mubr.bf16.mxu0 %v31
    %590 = vmatmul.mubr.bf16.gmra.mrb[0].mxu0 %v30
    %v591 = vpop.f32.mrb[0].mxu0
    %v592 = vadd.f32 %v171, %v591
    %v593 = vpop.f32.mrb[0].mxu0
    %v594 = vpop.f32.mrb[0].mxu0
    %v595 = vpop.f32.mrb[0].mxu0
    %596 = vdwg.mxu0
    %597 = vmatprep.subr.bf16.mxu0 0
    %598 = vmatpush1.bf16.msra.mxu0 %v445
    %599 = vmatprep.subr.bf16.mxu0 0
    %600 = vmatpush1.bf16.msra.mxu0 %v446
    %601 = vmatprep.subr.bf16.mxu0 0
    %602 = vmatpush1.bf16.msra.mxu0 %v447
    %603 = vmatprep.subr.bf16.mxu0 0
    %604 = vmatpush1.bf16.msra.mxu0 %v448
    %605 = vmatprep.subr.bf16.mxu0 0
    %606 = vmatpush1.bf16.msra.mxu0 %v449
    %607 = vmatprep.subr.bf16.mxu0 0
    %608 = vmatpush1.bf16.msra.mxu0 %v450
    %609 = vmatprep.subr.bf16.mxu0 0
    %610 = vmatpush1.bf16.msra.mxu0 %v451
    %611 = vmatprep.subr.bf16.mxu0 0
    %612 = vmatpush1.bf16.msra.mxu0 %v452
    %613 = vmatprep.subr.bf16.mxu0 0
    %614 = vmatpush1.bf16.msra.mxu0 %v453
    %615 = vmatprep.subr.bf16.mxu0 0
    %616 = vmatpush1.bf16.msra.mxu0 %v454
    %617 = vmatprep.subr.bf16.mxu0 0
    %618 = vmatpush1.bf16.msra.mxu0 %v455
    %619 = vmatprep.subr.bf16.mxu0 0
    %620 = vmatpush1.bf16.msra.mxu0 %v456
    %621 = vmatprep.subr.bf16.mxu0 0
    %622 = vmatpush1.bf16.msra.mxu0 %v457
    %623 = vmatprep.subr.bf16.mxu0 0
    %624 = vmatpush1.bf16.msra.mxu0 %v458
    %625 = vmatprep.subr.bf16.mxu0 0
    %626 = vmatpush1.bf16.msra.mxu0 %v459
    %627 = vmatprep.subr.bf16.mxu0 0
    %628 = vmatpush1.bf16.msra.mxu0 %v460
    %629 = vmatprep.mubr.bf16.mxu0 %v33
    %630 = vmatmul.mubr.bf16.gmra.mrb[0].mxu0 %v32
    %v631 = vpop.f32.mrb[0].mxu0
    %v632 = vadd.f32 %v592, %v631
    %v633 = vpop.f32.mrb[0].mxu0
    %v634 = vpop.f32.mrb[0].mxu0
    %v635 = vpop.f32.mrb[0].mxu0
    %636 = vdwg.mxu0
    %637 = vmatprep.subr.bf16.mxu0 0
    %638 = vmatpush1.bf16.msra.mxu0 %v461
    %639 = vmatprep.subr.bf16.mxu0 0
    %640 = vmatpush1.bf16.msra.mxu0 %v462
    %641 = vmatprep.subr.bf16.mxu0 0
    %642 = vmatpush1.bf16.msra.mxu0 %v463
    %643 = vmatprep.subr.bf16.mxu0 0
    %644 = vmatpush1.bf16.msra.mxu0 %v464
    %645 = vmatprep.subr.bf16.mxu0 0
    %646 = vmatpush1.bf16.msra.mxu0 %v465
    %647 = vmatprep.subr.bf16.mxu0 0
    %648 = vmatpush1.bf16.msra.mxu0 %v466
    %649 = vmatprep.subr.bf16.mxu0 0
    %650 = vmatpush1.bf16.msra.mxu0 %v467
    %651 = vmatprep.subr.bf16.mxu0 0
    %652 = vmatpush1.bf16.msra.mxu0 %v468
    %653 = vmatprep.subr.bf16.mxu0 0
    %654 = vmatpush1.bf16.msra.mxu0 %v469
    %655 = vmatprep.subr.bf16.mxu0 0
    %656 = vmatpush1.bf16.msra.mxu0 %v470
    %657 = vmatprep.subr.bf16.mxu0 0
    %658 = vmatpush1.bf16.msra.mxu0 %v471
    %659 = vmatprep.subr.bf16.mxu0 0
    %660 = vmatpush1.bf16.msra.mxu0 %v472
    %661 = vmatprep.subr.bf16.mxu0 0
    %662 = vmatpush1.bf16.msra.mxu0 %v473
    %663 = vmatprep.subr.bf16.mxu0 0
    %664 = vmatpush1.bf16.msra.mxu0 %v474
    %665 = vmatprep.subr.bf16.mxu0 0
    %666 = vmatpush1.bf16.msra.mxu0 %v475
    %667 = vmatprep.subr.bf16.mxu0 0
    %668 = vmatpush1.bf16.msra.mxu0 %v476
    %669 = vmatprep.mubr.bf16.mxu0 %v35
    %670 = vmatmul.mubr.bf16.gmra.mrb[0].mxu0 %v34
    %v671 = vpop.f32.mrb[0].mxu0
    %v672 = vadd.f32 %v632, %v671
    %v673 = vpop.f32.mrb[0].mxu0
    %v674 = vpop.f32.mrb[0].mxu0
    %v675 = vpop.f32.mrb[0].mxu0
    %676 = vdwg.mxu0
    %677 = vmatprep.subr.bf16.mxu0 0
    %678 = vmatpush1.bf16.msra.mxu0 %v477
    %679 = vmatprep.subr.bf16.mxu0 0
    %680 = vmatpush1.bf16.msra.mxu0 %v478
    %681 = vmatprep.subr.bf16.mxu0 0
    %682 = vmatpush1.bf16.msra.mxu0 %v479
    %683 = vmatprep.subr.bf16.mxu0 0
    %684 = vmatpush1.bf16.msra.mxu0 %v480
    %685 = vmatprep.subr.bf16.mxu0 0
    %686 = vmatpush1.bf16.msra.mxu0 %v481
    %687 = vmatprep.subr.bf16.mxu0 0
    %688 = vmatpush1.bf16.msra.mxu0 %v482
    %689 = vmatprep.subr.bf16.mxu0 0
    %690 = vmatpush1.bf16.msra.mxu0 %v483
    %691 = vmatprep.subr.bf16.mxu0 0
    %692 = vmatpush1.bf16.msra.mxu0 %v484
    %693 = vmatprep.subr.bf16.mxu0 0
    %694 = vmatpush1.bf16.msra.mxu0 %v485
    %695 = vmatprep.subr.bf16.mxu0 0
    %696 = vmatpush1.bf16.msra.mxu0 %v486
    %697 = vmatprep.subr.bf16.mxu0 0
    %698 = vmatpush1.bf16.msra.mxu0 %v487
    %699 = vmatprep.subr.bf16.mxu0 0
    %700 = vmatpush1.bf16.msra.mxu0 %v488
    %701 = vmatprep.subr.bf16.mxu0 0
    %702 = vmatpush1.bf16.msra.mxu0 %v489
    %703 = vmatprep.subr.bf16.mxu0 0
    %704 = vmatpush1.bf16.msra.mxu0 %v490
    %705 = vmatprep.subr.bf16.mxu0 0
    %706 = vmatpush1.bf16.msra.mxu0 %v491
    %707 = vmatprep.subr.bf16.mxu0 0
    %708 = vmatpush1.bf16.msra.mxu0 %v492
    %709 = vmatprep.mubr.bf16.mxu0 %v37
    %710 = vmatmul.mubr.bf16.gmra.mrb[0].mxu0 %v36
    %v711 = vpop.f32.mrb[0].mxu0
    %v712 = vadd.f32 %v672, %v711
    %v713 = vpop.f32.mrb[0].mxu0
    %v714 = vpop.f32.mrb[0].mxu0
    %v715 = vpop.f32.mrb[0].mxu0
    %716 = vdwg.mxu0
    %v717 = vmul.f32 %v712, 0.5
    %v718 = vtanh.pop %v717
    %v719 = vadd.f32 %v718, 1.0
    %v720 = vmul.f32 %v719, 0.5
    %v721 = vld [vmem:[%s3] sm:$0xff]
    %v722 = vld [vmem:[%s3 + $0x8] sm:$0xff]
    %v723 = vld [vmem:[%s3 + $0x10] sm:$0xff]
    %v724 = vld [vmem:[%s3 + $0x18] sm:$0xff]
    %v725 = vld [vmem:[%s3 + $0x20] sm:$0xff]
    %v726 = vld [vmem:[%s3 + $0x28] sm:$0xff]
    %v727 = vld [vmem:[%s3 + $0x30] sm:$0xff]
    %v728 = vld [vmem:[%s3 + $0x38] sm:$0xff]
    %v729 = vld [vmem:[%s4] sm:$0x1]
    %v731 = vlaneseq
    %v732 = vshrl.u32 %v731, 7
    %v733 = vsub.s32 0, %v732
    %v734 = vrot.slane %v729, %v733
    %vm736 = vcmask 523264
    %v738 = vsel %vm736, %v720, 0
    %740 = vmatprep.subr.mxu0 0.0
    %741 = vmatpush1.msra.mxu0 %v721
    %742 = vmatprep.subr.mxu0 0.0
    %743 = vmatpush1.msra.mxu0 %v722
    %744 = vmatprep.subr.mxu0 0.0
    %745 = vmatpush1.msra.mxu0 %v723
    %746 = vmatprep.subr.mxu0 0.0
    %747 = vmatpush1.msra.mxu0 %v724
    %748 = vmatprep.subr.mxu0 0.0
    %749 = vmatpush1.msra.mxu0 %v725
    %750 = vmatprep.subr.mxu0 0.0
    %751 = vmatpush1.msra.mxu0 %v726
    %752 = vmatprep.subr.mxu0 0.0
    %753 = vmatpush1.msra.mxu0 %v727
    %754 = vmatprep.subr.mxu0 0.0
    %755 = vmatpush1.msra.mxu0 %v728
    %756 = vmatprep.subr.mxu0 0.0
    %757 = vmatpush1.msra.mxu0 0.0
    %758 = vmatprep.subr.mxu0 0.0
    %759 = vmatpush1.msra.mxu0 0.0
    %760 = vmatprep.subr.mxu0 0.0
    %761 = vmatpush1.msra.mxu0 0.0
    %762 = vmatprep.subr.mxu0 0.0
    %763 = vmatpush1.msra.mxu0 0.0
    %764 = vmatprep.subr.mxu0 0.0
    %765 = vmatpush1.msra.mxu0 0.0
    %766 = vmatprep.subr.mxu0 0.0
    %767 = vmatpush1.msra.mxu0 0.0
    %768 = vmatprep.subr.mxu0 0.0
    %769 = vmatpush1.msra.mxu0 0.0
    %770 = vmatprep.subr.mxu0 0.0
    %771 = vmatpush1.msra.mxu0 0.0
    %772 = vmatprep.subr.mxu0 0.0
    %773 = vmatpush1.msra.mxu0 0.0
    %774 = vmatprep.subr.mxu0 0.0
    %775 = vmatpush1.msra.mxu0 0.0
    %776 = vmatprep.subr.mxu0 0.0
    %777 = vmatpush1.msra.mxu0 0.0
    %778 = vmatprep.subr.mxu0 0.0
    %779 = vmatpush1.msra.mxu0 0.0
    %780 = vmatprep.subr.mxu0 0.0
    %781 = vmatpush1.msra.mxu0 0.0
    %782 = vmatprep.subr.mxu0 0.0
    %783 = vmatpush1.msra.mxu0 0.0
    %784 = vmatprep.subr.mxu0 0.0
    %785 = vmatpush1.msra.mxu0 0.0
    %786 = vmatprep.subr.mxu0 0.0
    %787 = vmatpush1.msra.mxu0 0.0
    %788 = vmatprep.subr.mxu0 0.0
    %789 = vmatpush1.msra.mxu0 0.0
    %790 = vmatprep.subr.mxu0 0.0
    %791 = vmatpush1.msra.mxu0 0.0
    %792 = vmatprep.subr.mxu0 0.0
    %793 = vmatpush1.msra.mxu0 0.0
    %794 = vmatprep.subr.mxu0 0.0
    %795 = vmatpush1.msra.mxu0 0.0
    %796 = vmatprep.subr.mxu0 0.0
    %797 = vmatpush1.msra.mxu0 0.0
    %798 = vmatprep.subr.mxu0 0.0
    %799 = vmatpush1.msra.mxu0 0.0
    %800 = vmatprep.subr.mxu0 0.0
    %801 = vmatpush1.msra.mxu0 0.0
    %802 = vmatprep.subr.mxu0 0.0
    %803 = vmatpush1.msra.mxu0 0.0
    %804 = vmatprep.mubr.f32.mxu0 0.0
    %805 = vmatmul.mubr.f32.gmra.mrb[0].mxu0 %v738
    %v806 = vpop.f32.mrb[0].mxu0
    %v807 = vadd.f32 %v734, %v806
    %v808 = vpop.f32.mrb[0].mxu0
    %809 = vdwg.mxu0
    %810 = vmax.xlane.f32.xlu0 %v807
    %v811 = vpop.xlane.xlu0 %810
    %v812 = vsub.f32 %v807, %v811
    %v813 = vmul.f32 %v812, 1.442695
    %v814 = vpow.pop %v813
    %815 = vadd.xlane.f32.xlu0 %v814
    %v816 = vpop.xlane.xlu0 %815
    %v817 = vrcp.pop %v816
    %v818 = vmul.f32 %v814, %v817
    %vm819 = vcmask 293888
    %820 = vst.msk [vmem:[#allocation2] sm:$0xff] %vm819, %v818
    // Predicated region
    $region22: #{net_forward.1} parent=1 // pred_check
      _
    $region23: #{net_forward.1} parent=1 // pred_check_branch
      %822 = sbr.rel (0) target = $region25
    $region24: #{net_forward.1} parent=1 // pred_region
      %s824 = ssub.s32 128, 128
      %825 = vsyncadd [#allocation3], %s824
      %s827 = sshll.u32 [#allocation2], 4
      %s828 = int_to_ptr.vmem [resolvable:$true] %s827
      %830 = dma.vmem_to_hbm [thread:$0]  %s828, 128, %s5, [#allocation3]
    $region25: #{net_forward.1} parent=1 // pred_fallthru
      _
    // Predicated region
    $region26: #{net_forward.1} parent=1 // pred_check
      _
    $region27: #{net_forward.1} parent=1 // pred_check_branch
      %832 = sbr.rel (0) target = $region29
    $region28: #{net_forward.1} parent=1 // pred_region
      %833 = dma.done [#allocation3], 128
    $region29: #{net_forward.1} parent=1 // pred_fallthru
      _
    %834 = vsyncpa [#allocation3], 1

</llo_original>
